<compile_context>
chip_gen: v7x
topology: tpu7x:2x2x1
jax: 0.10.0
libtpu: 0.0.40
codegen_flags: <defaults>
</compile_context>

<pallas_src>
import functools

import jax
import jax.numpy as jnp
from jax import lax
from jax.experimental import pallas as pl
from jax.experimental.pallas import tpu as pltpu


_ROW_ALIGN = 32                         # row blocks stay tile-aligned for f32/bf16/int8
_TARGET_BLOCK_BYTES = 8 * 1024 * 1024   # per-step input block (Pallas double-buffers it)
_VMEM_LIMIT_BYTES = 40 * 1024 * 1024    # 2x 8 MiB buffers + accumulator, fits all gens


def _l_color_kernel(x_ref, o_ref, acc_ref, *, img_h, blk_h, inv_num_px, mask_last):
    # x_ref:   (1, 3, blk_h, w) VMEM block (one row-stripe of one image)
    # o_ref:   (1, 1, 1, 1) output block, resident across the reduction axis
    # acc_ref: (3, w) float32 VMEM accumulator (persists across grid steps)
    j = pl.program_id(1)
    last = pl.num_programs(1) - 1

    @pl.when(j == 0)
    def _init():
        acc_ref[...] = jnp.zeros_like(acc_ref)

    if mask_last:
        @pl.when(j != last)
        def _full_block():
            acc_ref[...] += jnp.sum(x_ref[0], axis=1, dtype=jnp.float32)

        @pl.when(j == last)
        def _ragged_tail():
            # Pallas does NOT zero-fill the out-of-bounds rows of the boundary
            # block; mask them explicitly before accumulating.
            blk = x_ref[0]                                            # (3, blk_h, w)
            row = lax.broadcasted_iota(jnp.int32, (1, blk_h, blk.shape[-1]), 1)
            valid = (row + j * blk_h) < img_h
            blk = jnp.where(valid, blk, jnp.zeros((), blk.dtype))
            acc_ref[...] += jnp.sum(blk, axis=1, dtype=jnp.float32)
    else:
        acc_ref[...] += jnp.sum(x_ref[0], axis=1, dtype=jnp.float32)

    @pl.when(j == last)
    def _finalize():
        # One cross-lane (XLU) reduce per channel + tiny scalar epilogue, once.
        mr = jnp.sum(acc_ref[0:1, :]) * inv_num_px
        mg = jnp.sum(acc_ref[1:2, :]) * inv_num_px
        mb = jnp.sum(acc_ref[2:3, :]) * inv_num_px
        drg = (mr - mg) ** 2
        drb = (mr - mb) ** 2
        dgb = (mb - mg) ** 2
        k = jnp.sqrt(drg * drg + drb * drb + dgb * dgb)
        o_ref[...] = jnp.broadcast_to(k, (1, 1, 1, 1)).astype(o_ref.dtype)


def l_color(x, *, target_block_bytes=_TARGET_BLOCK_BYTES):
    """x: (b, 3, h, w) float array -> (b, 1, 1, 1), matching torch L_color."""
    b, c, h, w = x.shape
    assert c == 3, "L_color expects 3 channels (RGB)"
    itemsize = jnp.dtype(x.dtype).itemsize
    bytes_per_row = c * w * itemsize

    # Row-stripe size chosen by a byte budget (amortizes the ~0.35us grid-step
    # overhead), rounded to a tile-aligned multiple, with near-equal blocks so
    # the ragged tail is as small as possible. (Extremely wide images, where
    # even 32 rows blow the budget, would additionally want width tiling.)
    max_rows = max(
        _ROW_ALIGN,
        (target_block_bytes // max(bytes_per_row, 1)) // _ROW_ALIGN * _ROW_ALIGN,
    )
    if max_rows >= h:
        blk_h, n_steps = h, 1
    else:
        n_steps = pl.cdiv(h, max_rows)
        blk_h = pl.cdiv(pl.cdiv(h, n_steps), _ROW_ALIGN) * _ROW_ALIGN
        n_steps = pl.cdiv(h, blk_h)
    mask_last = (blk_h * n_steps != h)

    kernel = functools.partial(
        _l_color_kernel,
        img_h=h,
        blk_h=blk_h,
        inv_num_px=1.0 / float(h * w),
        mask_last=mask_last,
    )

    return pl.pallas_call(
        kernel,
        out_shape=jax.ShapeDtypeStruct((b, 1, 1, 1), x.dtype),
        grid_spec=pltpu.PrefetchScalarGridSpec(
            num_scalar_prefetch=0,
            grid=(b, n_steps),
            in_specs=[
                pl.BlockSpec((1, c, blk_h, w), lambda i, j: (i, 0, j, 0)),
            ],
            out_specs=pl.BlockSpec((1, 1, 1, 1), lambda i, j: (i, 0, 0, 0)),
            scratch_shapes=[pltpu.VMEM((c, w), jnp.float32)],
        ),
        compiler_params=pltpu.CompilerParams(
            # Batch axis sharded across cores; reduction axis sequential.
            # (For b==1 on multi-core chips one could additionally split the
            #  reduction across a second parallel axis with a JAX epilogue.)
            dimension_semantics=("parallel", "arbitrary"),
            vmem_limit_bytes=_VMEM_LIMIT_BYTES,
        ),
    )(x)


def _l_color_ref(x):
    # pure-JAX reference mirroring the PyTorch forward
    mean_rgb = jnp.mean(x.astype(jnp.float32), axis=(2, 3), keepdims=True)
    mr = mean_rgb[:, 0:1]
    mg = mean_rgb[:, 1:2]
    mb = mean_rgb[:, 2:3]
    drg = (mr - mg) ** 2
    drb = (mr - mb) ** 2
    dgb = (mb - mg) ** 2
    return jnp.sqrt(drg ** 2 + drb ** 2 + dgb ** 2).astype(x.dtype)


if __name__ == "__main__":
    # Case 1: small aligned shape, single grid step over rows.
    x = jax.random.uniform(jax.random.PRNGKey(0), (2, 3, 16, 16), dtype=jnp.float32)
    out = jax.block_until_ready(l_color(x))
    ref = _l_color_ref(x)
    assert out.shape == (2, 1, 1, 1)
    assert jnp.allclose(out, ref, atol=1e-6, rtol=1e-5), (out, ref)

    # Case 2: ragged height + tiny block budget -> multi-step accumulation and
    # the in-kernel boundary-row masking path (no wrapper padding anywhere).
    x2 = jax.random.uniform(jax.random.PRNGKey(1), (2, 3, 37, 160), dtype=jnp.float32)
    out2 = jax.block_until_ready(l_color(x2, target_block_bytes=1))
    ref2 = _l_color_ref(x2)
    assert out2.shape == (2, 1, 1, 1)
    assert jnp.allclose(out2, ref2, atol=1e-6, rtol=1e-5), (out2, ref2)

    print("KERNEL_OK")
</pallas_src>

<mosaic_0001>
module attributes {stable_mosaic.version = 11 : i64} {
  func.func @_l_color_kernel(%arg0: i32, %arg1: i32, %arg2: memref<1x3x16x16xf32, #tpu.memory_space<vmem>>, %arg3: memref<1x1x1x1xf32, #tpu.memory_space<vmem>>, %arg4: memref<3x16xf32, #tpu.memory_space<vmem>>) attributes {dimension_semantics = [#tpu.dimension_semantics<parallel>, #tpu.dimension_semantics<arbitrary>], iteration_bounds = array<i64: 2, 1>, scalar_prefetch = 0 : i64, scratch_operands = 1 : i64, tpu.core_type = #tpu.core_type<tc>, window_params = [{transform_indices = @transform_0, window_bounds = array<i64: 1, 3, 16, 16>}, {transform_indices = @transform_1, window_bounds = array<i64: 1, 1, 1, 1>}]} {
    %c0_i32 = arith.constant 0 : i32
    %0 = arith.cmpi eq, %arg1, %c0_i32 : i32
    %1 = arith.extui %0 : i1 to i32
    %c0_i32_0 = arith.constant 0 : i32
    %2 = arith.cmpi ne, %1, %c0_i32_0 : i32
    scf.if %2 {
      %cst_10 = arith.constant 0.000000e+00 : f32
      %12 = vector.broadcast %cst_10 : f32 to vector<3x16xf32>
      %c0_11 = arith.constant 0 : index
      %c0_12 = arith.constant 0 : index
      %13 = vector.load %arg4[%c0_11, %c0_12] : memref<3x16xf32, #tpu.memory_space<vmem>>, vector<3x16xf32>
      tpu.vector_store %arg4[%c0_11, %c0_12], %12 {strides = array<i32>} : memref<3x16xf32, #tpu.memory_space<vmem>>, vector<3x16xf32>,
    } else {
    }
    %c0 = arith.constant 0 : index
    %c0_1 = arith.constant 0 : index
    %3 = vector.load %arg4[%c0, %c0_1] : memref<3x16xf32, #tpu.memory_space<vmem>>, vector<3x16xf32>
    %c0_2 = arith.constant 0 : index
    %c0_3 = arith.constant 0 : index
    %c0_4 = arith.constant 0 : index
    %c0_5 = arith.constant 0 : index
    %4 = vector.load %arg2[%c0_2, %c0_3, %c0_4, %c0_5] : memref<1x3x16x16xf32, #tpu.memory_space<vmem>>, vector<1x3x16x16xf32>
    %5 = vector.shape_cast %4 : vector<1x3x16x16xf32> to vector<3x16x16xf32>
    %cst = arith.constant dense<0.000000e+00> : vector<3x16xf32>
    %6 = vector.multi_reduction <add>, %5, %cst [1] : vector<3x16x16xf32> to vector<3x16xf32>
    %7 = arith.addf %3, %6 : vector<3x16xf32>
    %c0_6 = arith.constant 0 : index
    %c0_7 = arith.constant 0 : index
    %8 = vector.load %arg4[%c0_6, %c0_7] : memref<3x16xf32, #tpu.memory_space<vmem>>, vector<3x16xf32>
    tpu.vector_store %arg4[%c0_6, %c0_7], %7 {strides = array<i32>} : memref<3x16xf32, #tpu.memory_space<vmem>>, vector<3x16xf32>,
    %c0_i32_8 = arith.constant 0 : i32
    %9 = arith.cmpi eq, %arg1, %c0_i32_8 : i32
    %10 = arith.extui %9 : i1 to i32
    %c0_i32_9 = arith.constant 0 : i32
    %11 = arith.cmpi ne, %10, %c0_i32_9 : i32
    scf.if %11 {
      %c0_10 = arith.constant 0 : index
      %c0_11 = arith.constant 0 : index
      %12 = vector.load %arg4[%c0_10, %c0_11] : memref<3x16xf32, #tpu.memory_space<vmem>>, vector<1x16xf32>
      %13 = vector.shape_cast %12 : vector<1x16xf32> to vector<1x1x16xf32>
      %cst_12 = arith.constant dense<0.000000e+00> : vector<1xf32>
      %14 = vector.multi_reduction <add>, %13, %cst_12 [1, 2] : vector<1x1x16xf32> to vector<1xf32>
      %15 = vector.shape_cast %14 : vector<1xf32> to vector<1x1x1xf32>
      %16 = vector.extract %15[0, 0, 0] : f32 from vector<1x1x1xf32>
      %cst_13 = arith.constant 3.906250e-03 : f32
      %17 = arith.mulf %16, %cst_13 : f32
      %c1 = arith.constant 1 : index
      %c0_14 = arith.constant 0 : index
      %18 = vector.load %arg4[%c1, %c0_14] : memref<3x16xf32, #tpu.memory_space<vmem>>, vector<1x16xf32>
      %19 = vector.shape_cast %18 : vector<1x16xf32> to vector<1x1x16xf32>
      %cst_15 = arith.constant dense<0.000000e+00> : vector<1xf32>
      %20 = vector.multi_reduction <add>, %19, %cst_15 [1, 2] : vector<1x1x16xf32> to vector<1xf32>
      %21 = vector.shape_cast %20 : vector<1xf32> to vector<1x1x1xf32>
      %22 = vector.extract %21[0, 0, 0] : f32 from vector<1x1x1xf32>
      %cst_16 = arith.constant 3.906250e-03 : f32
      %23 = arith.mulf %22, %cst_16 : f32
      %c2 = arith.constant 2 : index
      %c0_17 = arith.constant 0 : index
      %24 = vector.load %arg4[%c2, %c0_17] : memref<3x16xf32, #tpu.memory_space<vmem>>, vector<1x16xf32>
      %25 = vector.shape_cast %24 : vector<1x16xf32> to vector<1x1x16xf32>
      %cst_18 = arith.constant dense<0.000000e+00> : vector<1xf32>
      %26 = vector.multi_reduction <add>, %25, %cst_18 [1, 2] : vector<1x1x16xf32> to vector<1xf32>
      %27 = vector.shape_cast %26 : vector<1xf32> to vector<1x1x1xf32>
      %28 = vector.extract %27[0, 0, 0] : f32 from vector<1x1x1xf32>
      %cst_19 = arith.constant 3.906250e-03 : f32
      %29 = arith.mulf %28, %cst_19 : f32
      %30 = arith.subf %17, %23 : f32
      %31 = arith.mulf %30, %30 : f32
      %32 = arith.subf %17, %29 : f32
      %33 = arith.mulf %32, %32 : f32
      %34 = arith.subf %29, %23 : f32
      %35 = arith.mulf %34, %34 : f32
      %36 = arith.mulf %31, %31 : f32
      %37 = arith.mulf %33, %33 : f32
      %38 = arith.addf %36, %37 : f32
      %39 = arith.mulf %35, %35 : f32
      %40 = arith.addf %38, %39 : f32
      %41 = math.sqrt %40 : f32
      %42 = vector.broadcast %41 : f32 to vector<1x1x1x1xf32>
      %c0_20 = arith.constant 0 : index
      %c0_21 = arith.constant 0 : index
      %c0_22 = arith.constant 0 : index
      %c0_23 = arith.constant 0 : index
      %43 = vector.load %arg3[%c0_20, %c0_21, %c0_22, %c0_23] : memref<1x1x1x1xf32, #tpu.memory_space<vmem>>, vector<1x1x1x1xf32>
      tpu.vector_store %arg3[%c0_20, %c0_21, %c0_22, %c0_23], %42 {strides = array<i32>} : memref<1x1x1x1xf32, #tpu.memory_space<vmem>>, vector<1x1x1x1xf32>,
    } else {
    }
    return
  }
  func.func @transform_0(%arg0: i32, %arg1: i32) -> (i32, i32, i32, i32) {
    %c0_i32 = arith.constant 0 : i32
    %c0_i32_0 = arith.constant 0 : i32
    %c0_i32_1 = arith.constant 0 : i32
    return %arg0, %c0_i32, %arg1, %c0_i32_0 : i32, i32, i32, i32
  }
  func.func @transform_1(%arg0: i32, %arg1: i32) -> (i32, i32, i32, i32) {
    %c0_i32 = arith.constant 0 : i32
    %c0_i32_0 = arith.constant 0 : i32
    %c0_i32_1 = arith.constant 0 : i32
    %c0_i32_2 = arith.constant 0 : i32
    return %arg0, %c0_i32, %c0_i32_0, %c0_i32_1 : i32, i32, i32, i32
  }
}

</mosaic_0001>

<llo_original>
// kernel: tpu_custom_call.1
$region0: #{tpu_custom_call.1}
  #allocation0 [shape = 'u32[]', space=smem, size = 0x4, offset = 0x4, fixed_abs, tag = 'smem constant byte address 0x4 - core index']
  #allocation1 [shape = 'u32[144,128]{1,0:T(1,128)}', space=vmem, size = 0x12000, scoped, tag = 'internal scratch']
  #allocation2 [shape = 'f32[3,16]{1,0:T(4,128)}', space=vmem, size = 0x800, scoped, tag = 'scratch operand']
  %s0 = inlined_call_operand.hbm [shape: f32[2,3,16,16], index: 0, kind: input, shape index: {}]
  %s1 = inlined_call_operand.vmem [shape: f32[2,1,1,1], index: 1, kind: output, shape index: {}]
  %s2 = sld [smem:[#allocation0]]
  $region49: #{tpu_custom_call.1} parent=0
    _
  %s4 = ssub.s32 1, %s2
  %s5 = scalar_select 0, %s4, %s2
  $region1: #{tpu_custom_call.1} parent=0
    #allocation3 [shape = 'u8[49152]{0}', space=vmem, size = 0xc000, scoped, tag = 'input window, operand 0']
    #allocation4 [shape = 's32[2]{0}', space=sflag, size = 0x8, scoped, tag = 'scoped memory for tpu_custom_call.1']
    %6 = vsyncpa [#allocation4], 0
    %s7 = scalar_lea.sflag [#allocation4], 1
    %8 = vsyncpa %s7, 0
    loop: start=0, step=1, limit=4
    $region2: #{tpu_custom_call.1} parent=1 // loop_pre_header
      _
    $region3: #{tpu_custom_call.1} parent=1 // loop_header
      %s10 = sphi 0, %s14
      %p11 = scmp.ge.s32.totalorder %s10, 4
      %s17 = sphi 0, %s29
      %s18 = sphi 0, %s25
      %s19 = sphi 0, %s17
      %s20 = sphi 0, %s18
      %s21 = sphi 0, %s19
      %s22 = sphi 0, %s20
      %s34 = sphi 0, %s36
      %s37 = sphi 0, %s34
      %s38 = sphi 0, %s37
      %s54 = sphi 0, %s38
      %s60 = sphi 0, %s62
      %s63 = sphi 0, %s60
      %s64 = sphi 0, %s63
      %s80 = sphi 0, %s64
    $region4: #{tpu_custom_call.1} parent=1 // loop_header_branch
      %13 = sbr.rel (%p11) target = $region8
    $region5: #{tpu_custom_call.1} parent=1 // loop_body
      %s15 = ssub.s32 %s10, 1
      %s16 = ssub.s32 %s10, 2
      %s23 = sadd.s32 1, %s18
      %p24 = scmp.ge.s32.totalorder %s23, 1
      %s25 = scalar_select %p24, 0, %s23
      %s26 = sadd.s32 1, %s17
      %s27 = scalar_select %p24, %s26, %s17
      %p28 = scmp.ge.s32.totalorder %s27, 2
      %s29 = scalar_select %p28, 0, %s27
      %s30 = ssub.s32 %s17, %s29
      %s31 = ssub.s32 %s18, %s25
      %s32 = sor.u32 %s30, %s31
      %p33 = scmp.eq.s32.totalorder %s32, 0
      %s35 = sadd.s32 %s34, 1
      %s36 = scalar_select %p33, %s34, %s35
      %p39 = pneg %p33
      %p40 = scmp.eq.s32.totalorder %s10, 1
      %p41 = por %p39, %p40
      %p42 = scmp.ne.s32.totalorder %s34, %s37
      %p43 = scmp.eq.s32.totalorder %s10, 0
      %p44 = por %p42, %p43
      %p45 = scmp.ne.s32.totalorder %s34, %s37
      %p46 = scmp.eq.s32.totalorder %s15, 1
      %p47 = por %p45, %p46
      %p48 = scmp.ne.s32.totalorder %s37, %s38
      %p49 = scmp.eq.s32.totalorder %s15, 0
      %p50 = por %p48, %p49
      %p51 = scmp.ne.s32.totalorder %s37, %s38
      %p52 = scmp.eq.s32.totalorder %s16, 1
      %p53 = por %p51, %p52
      %p55 = scmp.ne.s32.totalorder %s38, %s54
      %p56 = scmp.eq.s32.totalorder %s16, 0
      %p57 = por %p55, %p56
      %s58 = ssub.s32 %s17, %s29
      %p59 = scmp.eq.s32.totalorder %s58, 0
      %s61 = sadd.s32 %s60, 1
      %s62 = scalar_select %p59, %s60, %s61
      %p65 = pneg %p59
      %p66 = scmp.eq.s32.totalorder %s10, 1
      %p67 = por %p65, %p66
      %p68 = scmp.ne.s32.totalorder %s60, %s63
      %p69 = scmp.eq.s32.totalorder %s10, 0
      %p70 = por %p68, %p69
      %p71 = scmp.ne.s32.totalorder %s60, %s63
      %p72 = scmp.eq.s32.totalorder %s15, 1
      %p73 = por %p71, %p72
      %p74 = scmp.ne.s32.totalorder %s63, %s64
      %p75 = scmp.eq.s32.totalorder %s15, 0
      %p76 = por %p74, %p75
      %p77 = scmp.ne.s32.totalorder %s63, %s64
      %p78 = scmp.eq.s32.totalorder %s16, 1
      %p79 = por %p77, %p78
      %p81 = scmp.ne.s32.totalorder %s64, %s80
      %p82 = scmp.eq.s32.totalorder %s16, 0
      %p83 = por %p81, %p82
      %p84 = scmp.le.s32.totalorder 1, %s10
      %p85 = scmp.lt.s32.totalorder %s10, 3
      %p86 = pnand %p84, %p85
      %p87 = pneg %p86
      // Predicated region
      $region9: #{tpu_custom_call.1} parent=5 // pred_check
        _
      $region10: #{tpu_custom_call.1} parent=5 // pred_check_branch
        %89 = sbr.rel (%p86) target = $region12
      $region11: #{tpu_custom_call.1} parent=5 // pred_region
        %s90 = ssub.s32 %s10, 1
      $region12: #{tpu_custom_call.1} parent=5 // pred_fallthru
        _
      %p91 = scmp.lt.s32.totalorder %s10, 2
      // Predicated region
      $region13: #{tpu_custom_call.1} parent=5 // pred_check
        %p92 = pneg %p91
      $region14: #{tpu_custom_call.1} parent=5 // pred_check_branch
        %94 = sbr.rel (%p92) target = $region16
      $region15: #{tpu_custom_call.1} parent=5 // pred_region
        // Predicated region
        $region17: #{tpu_custom_call.1} parent=15 // pred_check
          %p95 = pneg %p44
        $region18: #{tpu_custom_call.1} parent=15 // pred_check_branch
          %97 = sbr.rel (%p95) target = $region20
        $region19: #{tpu_custom_call.1} parent=15 // pred_region
          %s98 = sand.u32 %s34, 1
          %s99 = scalar_lea.sflag [#allocation4], %s98
          %s100 = sand.u32 %s34, 1
          %s101 = smul.addr %s100, 48
          %s102 = scalar_lea.vmem [#allocation3], %s101
          %s103 = smul.u32 2, %s18
          %s105 = ssub.s32 768, 768
          %106 = vsyncadd %s99, %s105
          %s107 = smul.addr %s17, 6
          %s108 = sadd.s32 %s103, %s107
          %s109 = smul.addr %s108, 128
          %s110 = scalar_lea.hbm %s0, %s109
          %s111 = sshll.u32 %s102, 4
          %s112 = int_to_ptr.vmem [resolvable:$true] %s111
          %117 = dma.hbm_to_vmem [thread:$0]  %s110, 768, %s112, %s99, 128, 128, 8
        $region20: #{tpu_custom_call.1} parent=15 // pred_fallthru
          _
      $region16: #{tpu_custom_call.1} parent=5 // pred_fallthru
        _
      %p118 = scmp.le.s32.totalorder 1, %s10
      %p119 = scmp.lt.s32.totalorder %s10, 3
      %p120 = pnand %p118, %p119
      %p121 = pneg %p120
      // Predicated region
      $region21: #{tpu_custom_call.1} parent=5 // pred_check
        _
      $region22: #{tpu_custom_call.1} parent=5 // pred_check_branch
        %123 = sbr.rel (%p120) target = $region24
      $region23: #{tpu_custom_call.1} parent=5 // pred_region
        %s124 = ssub.s32 %s10, 1
        %s125 = sand.u32 %s37, 1
        %s126 = scalar_lea.sflag [#allocation4], %s125
        %s127 = sand.u32 %s37, 1
        %s128 = smul.addr %s127, 48
        %s129 = scalar_lea.vmem [#allocation3], %s128
        // Predicated region
        $region25: #{tpu_custom_call.1} parent=23 // pred_check
          %p130 = pneg %p50
        $region26: #{tpu_custom_call.1} parent=23 // pred_check_branch
          %132 = sbr.rel (%p130) target = $region28
        $region27: #{tpu_custom_call.1} parent=23 // pred_region
          %133 = dma.done %s126, 768
        $region28: #{tpu_custom_call.1} parent=23 // pred_fallthru
          _
        %s134 = sand.u32 %s37, 1
        %s135 = scalar_lea.sflag [#allocation4], %s134
        %s136 = sand.u32 %s37, 1
        %s137 = smul.addr %s136, 48
        %s138 = scalar_lea.vmem [#allocation3], %s137
        %p139 = pneg %p50
        %p140 = pneg %p47
        %p141 = pneg %p76
        %p142 = pneg %p73
        %p143 = scmp.lt.s32.totalorder %s19, 1
        %s144 = scalar_select %p143, %s19, 1
        %s145 = scalar_lea.vmem %s1, %s144
        %s146 = smul.u32 2, %s20
        %p147 = scmp.lt.s32.totalorder %s19, 1
        %s148 = scalar_select %p147, %s19, 1
        %s149 = scalar_lea.vmem %s1, %s148
        %p150 = scmp.eq.s32.totalorder %s20, 0
        // Predicated region
        $region29: #{tpu_custom_call.1} parent=23 // pred_check
          %p151 = pneg %p150
        $region30: #{tpu_custom_call.1} parent=23 // pred_check_branch
          %153 = sbr.rel (%p151) target = $region32
        $region31: #{tpu_custom_call.1} parent=23 // pred_region
          %vm154 = vcmask 124928
          %155 = vst.msk [vmem:[#allocation2] sm:$0x7] %vm154, 0.0
        $region32: #{tpu_custom_call.1} parent=23 // pred_fallthru
          _
        %v156 = vld [vmem:[#allocation2] sm:$0x7]
        %v157 = vld [vmem:[%s129] sm:$0xff]
        %v158 = vld [vmem:[%s129 + $0x8] sm:$0xff]
        %v159 = vld [vmem:[%s129 + $0x10] sm:$0xff]
        %v160 = vld [vmem:[%s129 + $0x18] sm:$0xff]
        %v161 = vld [vmem:[%s129 + $0x20] sm:$0xff]
        %v162 = vld [vmem:[%s129 + $0x28] sm:$0xff]
        %vm163 = vcmask 130048
        %v164 = vsel %vm163, %v157, 0.0
        %v165 = vsel %vm163, %v158, 0.0
        %v166 = vadd.f32 %v164, %v165
        %v167 = vrot.slane %v166, 4
        %v168 = vadd.f32 %v166, %v167
        %v169 = vrot.slane %v168, 2
        %v170 = vadd.f32 %v168, %v169
        %v171 = vrot.slane %v170, 1
        %v172 = vadd.f32 %v170, %v171
        %v173 = vsel %vm163, %v159, 0.0
        %v174 = vsel %vm163, %v160, 0.0
        %v175 = vadd.f32 %v173, %v174
        %v176 = vrot.slane %v175, 4
        %v177 = vadd.f32 %v175, %v176
        %v178 = vrot.slane %v177, 2
        %v179 = vadd.f32 %v177, %v178
        %v180 = vrot.slane %v179, 1
        %v181 = vadd.f32 %v179, %v180
        %v182 = vsel %vm163, %v161, 0.0
        %v183 = vsel %vm163, %v162, 0.0
        %v184 = vadd.f32 %v182, %v183
        %v185 = vrot.slane %v184, 4
        %v186 = vadd.f32 %v184, %v185
        %v187 = vrot.slane %v186, 2
        %v188 = vadd.f32 %v186, %v187
        %v189 = vrot.slane %v188, 1
        %v190 = vadd.f32 %v188, %v189
        %vm194 = vcmask 1041409
        %v195 = vsel %vm194, %v181, %v172
        %vm196 = vcmask 1042434
        %v197 = vsel %vm196, %v190, %v195
        %v199 = vadd.f32 %v156, %v197
        %vm200 = vcmask 124928
        %201 = vst.msk [vmem:[#allocation2] sm:$0x7] %vm200, %v199
        // Predicated region
        $region33: #{tpu_custom_call.1} parent=23 // pred_check
          %p202 = pneg %p150
        $region34: #{tpu_custom_call.1} parent=23 // pred_check_branch
          %204 = sbr.rel (%p202) target = $region36
        $region35: #{tpu_custom_call.1} parent=23 // pred_region
          %v205 = vld [vmem:[#allocation2] sm:$0x1]
          %vm206 = vcmask 122880
          %v207 = vsel %vm206, %v205, 0.0
          %208 = vadd.xlane.f32.xlu0 %v207
          %v209 = vpop.xlane.xlu0 %208
          %v210 = vrot.slane %v209, 4
          %v211 = vadd.f32 %v209, %v210
          %v212 = vrot.slane %v211, 2
          %v213 = vadd.f32 %v211, %v212
          %v214 = vrot.slane %v213, 1
          %v215 = vadd.f32 %v213, %v214
          %s216 = vtos %v215
          %s217 = smul.f32 %s216, 0.00390625
          %v218 = vld [vmem:[#allocation2 + $0x1] sm:$0x1]
          %v219 = vsel %vm206, %v218, 0.0
          %220 = vadd.xlane.f32.xlu0 %v219
          %v221 = vpop.xlane.xlu0 %220
          %v222 = vrot.slane %v221, 4
          %v223 = vadd.f32 %v221, %v222
          %v224 = vrot.slane %v223, 2
          %v225 = vadd.f32 %v223, %v224
          %v226 = vrot.slane %v225, 1
          %v227 = vadd.f32 %v225, %v226
          %s228 = vtos %v227
          %s229 = smul.f32 %s228, 0.00390625
          %v230 = vld [vmem:[#allocation2 + $0x2] sm:$0x1]
          %v231 = vsel %vm206, %v230, 0.0
          %232 = vadd.xlane.f32.xlu0 %v231
          %v233 = vpop.xlane.xlu0 %232
          %v234 = vrot.slane %v233, 4
          %v235 = vadd.f32 %v233, %v234
          %v236 = vrot.slane %v235, 2
          %v237 = vadd.f32 %v235, %v236
          %v238 = vrot.slane %v237, 1
          %v239 = vadd.f32 %v237, %v238
          %s240 = vtos %v239
          %s241 = smul.f32 %s240, 0.00390625
          %s242 = ssub.f32 %s217, %s229
          %s243 = smul.f32 %s242, %s242
          %s244 = ssub.f32 %s217, %s241
          %s245 = smul.f32 %s244, %s244
          %s246 = ssub.f32 %s241, %s229
          %s247 = smul.f32 %s246, %s246
          %s248 = smul.f32 %s243, %s243
          %s249 = smul.f32 %s245, %s245
          %s250 = sadd.f32 %s248, %s249
          %s251 = smul.f32 %s247, %s247
          %s252 = sadd.f32 %s250, %s251
          %v253 = vstv %s252
          %v254 = vrsqrt.pop %v253
          %v255 = vmul.f32 %v253, %v254
          %vm256 = vcmp.eq.f32.partialorder %v253, inf
          %v257 = vsel %vm256, %v253, %v255
          %vm258 = vcmp.eq.f32.partialorder %v253, 0.0
          %v259 = vand.u32 %v253, 2147483648
          %v260 = vsel %vm258, %v259, %v257
          %s261 = vtos %v260
          %v262 = vstv %s261
          %vm263 = vcmask 0
          %264 = vst.msk [vmem:[%s149] sm:$0x1] %vm263, %v262
        $region36: #{tpu_custom_call.1} parent=23 // pred_fallthru
          _
        %p265 = scmp.lt.s32.totalorder %s19, 1
        %s266 = scalar_select %p265, %s19, 1
        %s267 = scalar_lea.vmem %s1, %s266
        // Predicated region
        $region37: #{tpu_custom_call.1} parent=23 // pred_check
          %p268 = pneg %p73
        $region38: #{tpu_custom_call.1} parent=23 // pred_check_branch
          %270 = sbr.rel (%p268) target = $region40
        $region39: #{tpu_custom_call.1} parent=23 // pred_region
          _
        $region40: #{tpu_custom_call.1} parent=23 // pred_fallthru
          _
      $region24: #{tpu_custom_call.1} parent=5 // pred_fallthru
        _
      %p271 = scmp.le.s32.totalorder 2, %s10
      // Predicated region
      $region41: #{tpu_custom_call.1} parent=5 // pred_check
        %p272 = pneg %p271
      $region42: #{tpu_custom_call.1} parent=5 // pred_check_branch
        %274 = sbr.rel (%p272) target = $region44
      $region43: #{tpu_custom_call.1} parent=5 // pred_region
        %s275 = ssub.s32 %s10, 2
        // Predicated region
        $region45: #{tpu_custom_call.1} parent=43 // pred_check
          %p276 = pneg %p79
        $region46: #{tpu_custom_call.1} parent=43 // pred_check_branch
          %278 = sbr.rel (%p276) target = $region48
        $region47: #{tpu_custom_call.1} parent=43 // pred_region
          %p279 = scmp.lt.s32.totalorder %s21, 1
          %s280 = scalar_select %p279, %s21, 1
          %s281 = scalar_lea.vmem %s1, %s280
        $region48: #{tpu_custom_call.1} parent=43 // pred_fallthru
          _
      $region44: #{tpu_custom_call.1} parent=5 // pred_fallthru
        _
    $region6: #{tpu_custom_call.1} parent=1 // loop_footer
      %s14 = sadd.s32 1, %s10
    $region7: #{tpu_custom_call.1} parent=1 // loop_footer_branch
      %9 = sbr.rel target = $region3
    $region8: #{tpu_custom_call.1} parent=1 // loop_exit
      _
    %282 = vsyncpa [#allocation4], 1
    %s283 = scalar_lea.sflag [#allocation4], 1
    %284 = vsyncpa %s283, 1

</llo_original>
